<compile_context>
chip_gen: v7x
topology: tpu7x:2x2x1
jax: 0.10.0
libtpu: 0.0.40
codegen_flags: <defaults>
</compile_context>

<pallas_src>
import functools

import jax
import jax.numpy as jnp
from jax.experimental import pallas as pl
from jax.experimental.pallas import tpu as pltpu


def _scse_kernel(x_ref, w1t_ref, b1_ref, w2t_ref, b2_ref, ws_ref, bs_ref,
                 o_ref, *, inv_hw):
    # x block: (Bt, C, HW) in the I/O dtype.  No full-tile f32 copy is made.

    # ---- cSE: global average pool (f32 accumulation) + excitation MLP,
    #      batched over the Bt batch elements on the MXU.
    y = jnp.sum(x_ref[...], axis=2, dtype=jnp.float32) * inv_hw           # (Bt, C)
    h = jnp.dot(y, w1t_ref[...], preferred_element_type=jnp.float32) + b1_ref[...]
    h = jnp.maximum(h, 0.0)                                               # ReLU
    z = jax.nn.sigmoid(
        jnp.dot(h, w2t_ref[...], preferred_element_type=jnp.float32)
        + b2_ref[...])                                                    # (Bt, C)

    # ---- sSE: 1x1 conv C -> 1 as a VPU multiply + sublane reduce over C
    #      (avoids Bt separate M=1 MXU GEMVs and their MRF drains).
    ws_col = ws_ref[...].astype(x_ref.dtype)                              # (C, 1)
    s = jnp.sum(x_ref[...] * ws_col[None, :, :], axis=1,
                dtype=jnp.float32)                                        # (Bt, HW)
    s = jax.nn.sigmoid(s + bs_ref[0])                                     # scalar bias (SMEM)

    # ---- combine: cSE(x) + sSE(x) = x * (z + s).  Gate cast to the I/O dtype
    #      once so bf16 I/O combines as packed bf16 (v6e/v7x); no-op for f32.
    zc = z.astype(x_ref.dtype)
    sc = s.astype(x_ref.dtype)
    o_ref[...] = (x_ref[...] * (zc[:, :, None] + sc[:, None, :])).astype(o_ref.dtype)


def _device_info():
    """Return (is_v7x_like, vmem_capacity_bytes); robust if introspection fails."""
    kind = ""
    try:
        kind = (getattr(jax.devices()[0], "device_kind", "") or "")
    except Exception:
        pass
    is_v7x = "7" in kind
    vmem_cap = (64 << 20) if is_v7x else (128 << 20)
    try:
        vmem_cap = int(pltpu.get_tpu_info().vmem_capacity_bytes)
    except Exception:
        pass
    return is_v7x, vmem_cap


def _choose_batch_tile(b, fits, keep_two_steps):
    """Largest divisor of b whose tile passes `fits`; Bt=1 is the fallback."""
    best = 1
    for bt in range(1, b + 1):
        if b % bt:
            continue
        if keep_two_steps and b >= 2 and (b // bt) < 2:
            continue   # keep >= 2 grid steps only when 2 TCs can share the batch axis
        if bt > 1 and not fits(bt):
            continue
        best = bt
    return best


def scse_forward(x_nchw, params):
    """x_nchw: (B, C, H, W) f32 or bf16; params: dict from init_params."""
    B, C, H, W = x_nchw.shape
    HW = H * W
    # No HBM padding/unpadding passes: full last-dim blocks satisfy (8,128).
    x = x_nchw.reshape(B, C, HW)

    w1t, b1, w2t, b2, ws, bs = (params["w1t"], params["b1"], params["w2t"],
                                params["b2"], params["ws"], params["bs"])
    Cr = w1t.shape[1]

    is_v7x, vmem_cap = _device_info()
    if vmem_cap >= (128 << 20):
        vmem_ceiling = 100 << 20                       # v5e / v6e
    else:
        vmem_ceiling = max(24 << 20, vmem_cap - (12 << 20))   # ~52 MiB on v7x

    itemsize = jnp.dtype(x.dtype).itemsize
    pb_io = C * HW * itemsize        # per-batch bytes at I/O dtype
    pb_f32 = C * HW * 4              # per-batch bytes of f32 working set

    def vmem_estimate(bt):
        # 2x double-buffered input + 2x output tiles + ~3 full-tile f32
        # temporaries (gate / reduce intermediates) + weights & slack.
        return 4 * bt * pb_io + 3 * bt * pb_f32 + (4 << 20)

    tile_budget = 8 << 20            # 4-8 MiB I/O tiles hide per-step overhead

    def fits(bt):
        return bt * pb_io <= tile_budget and vmem_estimate(bt) <= vmem_ceiling

    Bt = _choose_batch_tile(B, fits, keep_two_steps=is_v7x)
    # TODO(synk): if even Bt=1 exceeds vmem_ceiling (huge single-image slab),
    # an HW-tiled two-pass structure is required; not implemented here.
    vmem_limit = int(min(max(vmem_estimate(Bt), 32 << 20), vmem_ceiling))

    kernel = functools.partial(_scse_kernel, inv_hw=1.0 / float(HW))

    out = pl.pallas_call(
        kernel,
        out_shape=jax.ShapeDtypeStruct((B, C, HW), x.dtype),
        grid_spec=pltpu.PrefetchScalarGridSpec(
            num_scalar_prefetch=0,
            grid=(B // Bt,),
            in_specs=[
                pl.BlockSpec((Bt, C, HW), lambda b: (b, 0, 0)),     # x
                pl.BlockSpec((C, Cr), lambda b: (0, 0)),            # W1^T
                pl.BlockSpec((1, Cr), lambda b: (0, 0)),            # b1
                pl.BlockSpec((Cr, C), lambda b: (0, 0)),            # W2^T
                pl.BlockSpec((1, C), lambda b: (0, 0)),             # b2
                pl.BlockSpec((C, 1), lambda b: (0, 0)),             # sSE conv weight
                pl.BlockSpec(memory_space=pltpu.MemorySpace.SMEM),  # sSE conv bias
            ],
            out_specs=pl.BlockSpec((Bt, C, HW), lambda b: (b, 0, 0)),
        ),
        compiler_params=pltpu.CompilerParams(
            dimension_semantics=("parallel",),
            vmem_limit_bytes=vmem_limit),
    )(x, w1t, b1, w2t, b2, ws, bs)

    return out.reshape(B, C, H, W)


def init_params(key, channel, ratio=16):
    cr = max(1, channel // ratio)
    k1, k2, k3, k4, k5, k6 = jax.random.split(key, 6)
    # cSE excitation: Linear(C -> Cr), Linear(Cr -> C); stored transposed so
    # the batched in-kernel matmuls need no transposes.
    w1t = jax.random.normal(k1, (channel, cr), jnp.float32) * 0.1    # = W1^T
    b1 = jax.random.normal(k2, (1, cr), jnp.float32) * 0.1
    w2t = jax.random.normal(k3, (cr, channel), jnp.float32) * 0.1    # = W2^T
    b2 = jax.random.normal(k4, (1, channel), jnp.float32) * 0.1
    # sSE: Conv2d(C -> 1, k=1): weight stored as a (C, 1) column; scalar bias.
    ws = jax.random.normal(k5, (channel, 1), jnp.float32) * 0.1
    bs = jax.random.normal(k6, (1,), jnp.float32) * 0.1
    return dict(w1t=w1t, b1=b1, w2t=w2t, b2=b2, ws=ws, bs=bs)


def scse_reference(x, p):
    """Pure-JAX reference mirroring the PyTorch scSE_Module (f32, high precision)."""
    y = jnp.mean(x, axis=(2, 3))                                          # (B, C)
    h = jnp.maximum(jnp.dot(y, p["w1t"], precision="highest") + p["b1"], 0.0)
    z = jax.nn.sigmoid(jnp.dot(h, p["w2t"], precision="highest") + p["b2"])
    cse = x * z[:, :, None, None]
    s = jnp.einsum("bchw,c->bhw", x, p["ws"][:, 0], precision="highest") + p["bs"][0]
    sse = x * jax.nn.sigmoid(s)[:, None, :, :]
    return cse + sse


if __name__ == "__main__":
    key = jax.random.PRNGKey(0)
    kx, kp, kx2 = jax.random.split(key, 3)

    # Case 1: lane-aligned spatial dims (16x16 -> HW=256), f32 I/O.
    B, C, H, W = 2, 32, 16, 16              # channel=32, ratio=16 -> hidden=2
    params = init_params(kp, C, ratio=16)
    x = jax.random.normal(kx, (B, C, H, W), jnp.float32)
    out = jax.block_until_ready(scse_forward(x, params))
    ref = scse_reference(x, params)
    assert out.shape == (B, C, H, W)
    assert jnp.allclose(out, ref, atol=2e-3, rtol=2e-3)

    # Case 2: non-multiple-of-128 spatial map (10x10 -> HW=100, handled by
    # masked in-kernel stores, no wrapper-side pad/slice HBM passes) and a
    # multi-batch grid (B=8).
    B2, H2, W2 = 8, 10, 10
    x2 = jax.random.normal(kx2, (B2, C, H2, W2), jnp.float32)
    out2 = jax.block_until_ready(scse_forward(x2, params))
    ref2 = scse_reference(x2, params)
    assert jnp.allclose(out2, ref2, atol=2e-3, rtol=2e-3)

    # Case 3: bf16 I/O halves HBM traffic; gate applied in bf16 on the store path.
    x_bf = x.astype(jnp.bfloat16)
    out_bf = jax.block_until_ready(scse_forward(x_bf, params))
    assert out_bf.dtype == jnp.bfloat16
    ref_bf = scse_reference(x_bf.astype(jnp.float32), params)
    assert jnp.allclose(out_bf.astype(jnp.float32), ref_bf, atol=1e-1, rtol=1e-1)

    print("KERNEL_OK")
</pallas_src>

<mosaic_0001>
module attributes {stable_mosaic.version = 11 : i64} {
  func.func @_scse_kernel(%arg0: i32, %arg1: memref<2x32x256xf32, #tpu.memory_space<vmem>>, %arg2: memref<32x2xf32, #tpu.memory_space<vmem>>, %arg3: memref<1x2xf32, #tpu.memory_space<vmem>>, %arg4: memref<2x32xf32, #tpu.memory_space<vmem>>, %arg5: memref<1x32xf32, #tpu.memory_space<vmem>>, %arg6: memref<32x1xf32, #tpu.memory_space<vmem>>, %arg7: memref<1xf32, #tpu.memory_space<smem>>, %arg8: memref<2x32x256xf32, #tpu.memory_space<vmem>>) attributes {dimension_semantics = [#tpu.dimension_semantics<parallel>], iteration_bounds = array<i64: 1>, scalar_prefetch = 0 : i64, scratch_operands = 0 : i64, tpu.core_type = #tpu.core_type<tc>, window_params = [{transform_indices = @transform_0, window_bounds = array<i64: 2, 32, 256>}, {pipeline_mode = #tpu.pipeline_mode<synchronous>, transform_indices = @transform_1, window_bounds = array<i64: 32, 2>}, {pipeline_mode = #tpu.pipeline_mode<synchronous>, transform_indices = @transform_2, window_bounds = array<i64: 1, 2>}, {pipeline_mode = #tpu.pipeline_mode<synchronous>, transform_indices = @transform_3, window_bounds = array<i64: 2, 32>}, {pipeline_mode = #tpu.pipeline_mode<synchronous>, transform_indices = @transform_4, window_bounds = array<i64: 1, 32>}, {pipeline_mode = #tpu.pipeline_mode<synchronous>, transform_indices = @transform_5, window_bounds = array<i64: 32, 1>}, {transform_indices = @transform_6, window_bounds = array<i64: 1>}, {transform_indices = @transform_7, window_bounds = array<i64: 2, 32, 256>}]} {
    %c0 = arith.constant 0 : index
    %c0_0 = arith.constant 0 : index
    %c0_1 = arith.constant 0 : index
    %0 = vector.load %arg1[%c0, %c0_0, %c0_1] : memref<2x32x256xf32, #tpu.memory_space<vmem>>, vector<2x32x256xf32>
    %cst = arith.constant dense<0.000000e+00> : vector<2x32xf32>
    %1 = vector.multi_reduction <add>, %0, %cst [2] : vector<2x32x256xf32> to vector<2x32xf32>
    %cst_2 = arith.constant 3.906250e-03 : f32
    %2 = vector.broadcast %cst_2 : f32 to vector<2x32xf32>
    %3 = arith.mulf %1, %2 : vector<2x32xf32>
    %c0_3 = arith.constant 0 : index
    %c0_4 = arith.constant 0 : index
    %4 = vector.load %arg2[%c0_3, %c0_4] : memref<32x2xf32, #tpu.memory_space<vmem>>, vector<32x2xf32>
    %cst_5 = arith.constant dense<0.000000e+00> : vector<2x2xf32>
    %5 = tpu.matmul %3, %4, %cst_5 {dimension_numbers = #tpu.dot_dimension_numbers<[1], [0], [0], [1], [0, 0, 1, 1], [], []>} : vector<2x32xf32>, vector<32x2xf32>, vector<2x2xf32> -> vector<2x2xf32>
    %c0_6 = arith.constant 0 : index
    %c0_7 = arith.constant 0 : index
    %6 = vector.load %arg3[%c0_6, %c0_7] : memref<1x2xf32, #tpu.memory_space<vmem>>, vector<1x2xf32>
    %7 = vector.broadcast %6 : vector<1x2xf32> to vector<2x2xf32>
    %8 = arith.addf %5, %7 : vector<2x2xf32>
    %cst_8 = arith.constant 0.000000e+00 : f32
    %9 = vector.broadcast %cst_8 : f32 to vector<2x2xf32>
    %10 = arith.maximumf %8, %9 : vector<2x2xf32>
    %c0_9 = arith.constant 0 : index
    %c0_10 = arith.constant 0 : index
    %11 = vector.load %arg4[%c0_9, %c0_10] : memref<2x32xf32, #tpu.memory_space<vmem>>, vector<2x32xf32>
    %cst_11 = arith.constant dense<0.000000e+00> : vector<2x32xf32>
    %12 = tpu.matmul %10, %11, %cst_11 {dimension_numbers = #tpu.dot_dimension_numbers<[1], [0], [0], [1], [0, 0, 1, 1], [], []>} : vector<2x2xf32>, vector<2x32xf32>, vector<2x32xf32> -> vector<2x32xf32>
    %c0_12 = arith.constant 0 : index
    %c0_13 = arith.constant 0 : index
    %13 = vector.load %arg5[%c0_12, %c0_13] : memref<1x32xf32, #tpu.memory_space<vmem>>, vector<1x32xf32>
    %14 = vector.broadcast %13 : vector<1x32xf32> to vector<2x32xf32>
    %15 = arith.addf %12, %14 : vector<2x32xf32>
    %16 = arith.negf %15 : vector<2x32xf32>
    %17 = math.exp %16 : vector<2x32xf32>
    %cst_14 = arith.constant 1.000000e+00 : f32
    %18 = vector.broadcast %cst_14 : f32 to vector<2x32xf32>
    %19 = arith.addf %18, %17 : vector<2x32xf32>
    %20 = arith.divf %18, %19 : vector<2x32xf32>
    %c0_15 = arith.constant 0 : index
    %c0_16 = arith.constant 0 : index
    %21 = vector.load %arg6[%c0_15, %c0_16] : memref<32x1xf32, #tpu.memory_space<vmem>>, vector<32x1xf32>
    %c0_17 = arith.constant 0 : index
    %c0_18 = arith.constant 0 : index
    %c0_19 = arith.constant 0 : index
    %22 = vector.load %arg1[%c0_17, %c0_18, %c0_19] : memref<2x32x256xf32, #tpu.memory_space<vmem>>, vector<2x32x256xf32>
    %23 = vector.shape_cast %21 : vector<32x1xf32> to vector<1x32x1xf32>
    %24 = vector.broadcast %23 : vector<1x32x1xf32> to vector<2x32x256xf32>
    %25 = arith.mulf %22, %24 : vector<2x32x256xf32>
    %cst_20 = arith.constant dense<0.000000e+00> : vector<2x256xf32>
    %26 = vector.multi_reduction <add>, %25, %cst_20 [1] : vector<2x32x256xf32> to vector<2x256xf32>
    %c0_21 = arith.constant 0 : index
    %27 = memref.load %arg7[%c0_21] : memref<1xf32, #tpu.memory_space<smem>>
    %28 = vector.broadcast %27 : f32 to vector<2x256xf32>
    %29 = arith.addf %26, %28 : vector<2x256xf32>
    %30 = arith.negf %29 : vector<2x256xf32>
    %31 = math.exp %30 : vector<2x256xf32>
    %cst_22 = arith.constant 1.000000e+00 : f32
    %32 = vector.broadcast %cst_22 : f32 to vector<2x256xf32>
    %33 = arith.addf %32, %31 : vector<2x256xf32>
    %34 = arith.divf %32, %33 : vector<2x256xf32>
    %c0_23 = arith.constant 0 : index
    %c0_24 = arith.constant 0 : index
    %c0_25 = arith.constant 0 : index
    %35 = vector.load %arg1[%c0_23, %c0_24, %c0_25] : memref<2x32x256xf32, #tpu.memory_space<vmem>>, vector<2x32x256xf32>
    %36 = vector.shape_cast %20 : vector<2x32xf32> to vector<2x32x1xf32>
    %37 = vector.shape_cast %34 : vector<2x256xf32> to vector<2x1x256xf32>
    %38 = vector.broadcast %36 : vector<2x32x1xf32> to vector<2x32x256xf32>
    %39 = vector.broadcast %37 : vector<2x1x256xf32> to vector<2x32x256xf32>
    %40 = arith.addf %38, %39 : vector<2x32x256xf32>
    %41 = arith.mulf %35, %40 : vector<2x32x256xf32>
    %c0_26 = arith.constant 0 : index
    %c0_27 = arith.constant 0 : index
    %c0_28 = arith.constant 0 : index
    %42 = vector.load %arg8[%c0_26, %c0_27, %c0_28] : memref<2x32x256xf32, #tpu.memory_space<vmem>>, vector<2x32x256xf32>
    tpu.vector_store %arg8[%c0_26, %c0_27, %c0_28], %41 {strides = array<i32>} : memref<2x32x256xf32, #tpu.memory_space<vmem>>, vector<2x32x256xf32>,
    return
  }
  func.func @transform_0(%arg0: i32) -> (i32, i32, i32) {
    %c0_i32 = arith.constant 0 : i32
    %c0_i32_0 = arith.constant 0 : i32
    %c0_i32_1 = arith.constant 0 : i32
    return %arg0, %c0_i32, %c0_i32_0 : i32, i32, i32
  }
  func.func @transform_1(%arg0: i32) -> (i32, i32) {
    %c0_i32 = arith.constant 0 : i32
    %c0_i32_0 = arith.constant 0 : i32
    %c0_i32_1 = arith.constant 0 : i32
    return %c0_i32, %c0_i32_0 : i32, i32
  }
  func.func @transform_2(%arg0: i32) -> (i32, i32) {
    %c0_i32 = arith.constant 0 : i32
    %c0_i32_0 = arith.constant 0 : i32
    %c0_i32_1 = arith.constant 0 : i32
    return %c0_i32, %c0_i32_0 : i32, i32
  }
  func.func @transform_3(%arg0: i32) -> (i32, i32) {
    %c0_i32 = arith.constant 0 : i32
    %c0_i32_0 = arith.constant 0 : i32
    %c0_i32_1 = arith.constant 0 : i32
    return %c0_i32, %c0_i32_0 : i32, i32
  }
  func.func @transform_4(%arg0: i32) -> (i32, i32) {
    %c0_i32 = arith.constant 0 : i32
    %c0_i32_0 = arith.constant 0 : i32
    %c0_i32_1 = arith.constant 0 : i32
    return %c0_i32, %c0_i32_0 : i32, i32
  }
  func.func @transform_5(%arg0: i32) -> (i32, i32) {
    %c0_i32 = arith.constant 0 : i32
    %c0_i32_0 = arith.constant 0 : i32
    %c0_i32_1 = arith.constant 0 : i32
    return %c0_i32, %c0_i32_0 : i32, i32
  }
  func.func @transform_6(%arg0: i32) -> i32 {
    %c0_i32 = arith.constant 0 : i32
    %c0_i32_0 = arith.constant 0 : i32
    return %c0_i32 : i32
  }
  func.func @transform_7(%arg0: i32) -> (i32, i32, i32) {
    %c0_i32 = arith.constant 0 : i32
    %c0_i32_0 = arith.constant 0 : i32
    %c0_i32_1 = arith.constant 0 : i32
    return %arg0, %c0_i32, %c0_i32_0 : i32, i32, i32
  }
}

</mosaic_0001>

<llo_original>
// kernel: tpu_custom_call.1
$region0: #{tpu_custom_call.1}
  #allocation0 [shape = 'u32[]', space=smem, size = 0x4, offset = 0x4, fixed_abs, tag = 'smem constant byte address 0x4 - core index']
  #allocation1 [shape = 'u32[144,128]{1,0:T(1,128)}', space=vmem, size = 0x12000, scoped, tag = 'internal scratch']
  #allocation2 [shape = 'f32[1]{0:T(128)S(6)}', space=smem, size = 0x200, scoped, tag = 'scoped memory for tpu_custom_call.1']
  %s0 = inlined_call_operand.hbm [shape: f32[2,32,256], index: 0, kind: input, shape index: {}]
  %s1 = inlined_call_operand.vmem [shape: f32[32,2], index: 1, kind: input, shape index: {}]
  %s2 = inlined_call_operand.vmem [shape: f32[1,2], index: 2, kind: input, shape index: {}]
  %s3 = inlined_call_operand.vmem [shape: f32[2,32], index: 3, kind: input, shape index: {}]
  %s4 = inlined_call_operand.vmem [shape: f32[1,32], index: 4, kind: input, shape index: {}]
  %s5 = inlined_call_operand.vmem [shape: f32[32,1], index: 5, kind: input, shape index: {}]
  %s6 = inlined_call_operand.<no memory space> [shape: f32[1], index: 6, kind: input, shape index: {}]
  %s7 = inlined_call_operand.hbm [shape: f32[2,32,256], index: 7, kind: output, shape index: {}]
  %s8 = sld [smem:[#allocation0]]
  $region42: #{tpu_custom_call.1} parent=0
    _
  %s10 = ssub.s32 1, %s8
  %s11 = scalar_select 0, %s10, %s8
  %12 = sst [smem:[#allocation2]] %s6
  $region1: #{tpu_custom_call.1} parent=0
    #allocation3 [shape = 'u8[65536]{0}', space=vmem, size = 0x10000, scoped, tag = 'input window, operand 0, single buffered']
    #allocation4 [shape = 's32[1]{0}', space=sflag, size = 0x4, scoped, tag = 'scoped memory for tpu_custom_call.1']
    #allocation5 [shape = 's32[1]{0}', space=sflag, size = 0x4, scoped, tag = 'scoped memory for tpu_custom_call.1']
    #allocation6 [shape = 'u8[65536]{0}', space=vmem, size = 0x10000, scoped, tag = 'output window, operand 0, single buffered']
    %13 = vsyncpa [#allocation4], 0
    %14 = vsyncpa [#allocation5], 0
    // Predicated region
    $region2: #{tpu_custom_call.1} parent=1 // pred_check
      _
    $region3: #{tpu_custom_call.1} parent=1 // pred_check_branch
      %16 = sbr.rel (0) target = $region5
    $region4: #{tpu_custom_call.1} parent=1 // pred_region
      %s18 = ssub.s32 2048, 2048
      %19 = vsyncadd [#allocation4], %s18
      %s20 = sshll.u32 [#allocation3], 4
      %s21 = int_to_ptr.vmem [resolvable:$true] %s20
      %26 = dma.hbm_to_vmem [thread:$0]  %s0, 2048, %s21, [#allocation4], 256, 256, 16
    $region5: #{tpu_custom_call.1} parent=1 // pred_fallthru
      _
    // Predicated region
    $region6: #{tpu_custom_call.1} parent=1 // pred_check
      _
    $region7: #{tpu_custom_call.1} parent=1 // pred_check_branch
      %28 = sbr.rel (0) target = $region9
    $region8: #{tpu_custom_call.1} parent=1 // pred_region
      _
    $region9: #{tpu_custom_call.1} parent=1 // pred_fallthru
      _
    // Predicated region
    $region10: #{tpu_custom_call.1} parent=1 // pred_check
      _
    $region11: #{tpu_custom_call.1} parent=1 // pred_check_branch
      %30 = sbr.rel (0) target = $region13
    $region12: #{tpu_custom_call.1} parent=1 // pred_region
      _
    $region13: #{tpu_custom_call.1} parent=1 // pred_fallthru
      _
    // Predicated region
    $region14: #{tpu_custom_call.1} parent=1 // pred_check
      _
    $region15: #{tpu_custom_call.1} parent=1 // pred_check_branch
      %32 = sbr.rel (0) target = $region17
    $region16: #{tpu_custom_call.1} parent=1 // pred_region
      _
    $region17: #{tpu_custom_call.1} parent=1 // pred_fallthru
      _
    // Predicated region
    $region18: #{tpu_custom_call.1} parent=1 // pred_check
      _
    $region19: #{tpu_custom_call.1} parent=1 // pred_check_branch
      %34 = sbr.rel (0) target = $region21
    $region20: #{tpu_custom_call.1} parent=1 // pred_region
      _
    $region21: #{tpu_custom_call.1} parent=1 // pred_fallthru
      _
    // Predicated region
    $region22: #{tpu_custom_call.1} parent=1 // pred_check
      _
    $region23: #{tpu_custom_call.1} parent=1 // pred_check_branch
      %36 = sbr.rel (0) target = $region25
    $region24: #{tpu_custom_call.1} parent=1 // pred_region
      _
    $region25: #{tpu_custom_call.1} parent=1 // pred_fallthru
      _
    // Predicated region
    $region26: #{tpu_custom_call.1} parent=1 // pred_check
      _
    $region27: #{tpu_custom_call.1} parent=1 // pred_check_branch
      %38 = sbr.rel (0) target = $region29
    $region28: #{tpu_custom_call.1} parent=1 // pred_region
      _
    $region29: #{tpu_custom_call.1} parent=1 // pred_fallthru
      _
    // Predicated region
    $region30: #{tpu_custom_call.1} parent=1 // pred_check
      _
    $region31: #{tpu_custom_call.1} parent=1 // pred_check_branch
      %40 = sbr.rel (0) target = $region33
    $region32: #{tpu_custom_call.1} parent=1 // pred_region
      %41 = dma.done [#allocation4], 2048
    $region33: #{tpu_custom_call.1} parent=1 // pred_fallthru
      _
    %v42 = vld [vmem:[#allocation3] sm:$0xff]
    %v43 = vld [vmem:[#allocation3 + $0x8] sm:$0xff]
    %v44 = vld [vmem:[#allocation3 + $0x10] sm:$0xff]
    %v45 = vld [vmem:[#allocation3 + $0x18] sm:$0xff]
    %v46 = vld [vmem:[#allocation3 + $0x20] sm:$0xff]
    %v47 = vld [vmem:[#allocation3 + $0x28] sm:$0xff]
    %v48 = vld [vmem:[#allocation3 + $0x30] sm:$0xff]
    %v49 = vld [vmem:[#allocation3 + $0x38] sm:$0xff]
    %v50 = vld [vmem:[#allocation3 + $0x40] sm:$0xff]
    %v51 = vld [vmem:[#allocation3 + $0x48] sm:$0xff]
    %v52 = vld [vmem:[#allocation3 + $0x50] sm:$0xff]
    %v53 = vld [vmem:[#allocation3 + $0x58] sm:$0xff]
    %v54 = vld [vmem:[#allocation3 + $0x60] sm:$0xff]
    %v55 = vld [vmem:[#allocation3 + $0x68] sm:$0xff]
    %v56 = vld [vmem:[#allocation3 + $0x70] sm:$0xff]
    %v57 = vld [vmem:[#allocation3 + $0x78] sm:$0xff]
    %v58 = vadd.f32 %v42, %v43
    %59 = vadd.xlane.f32.xlu0 %v58
    %v60 = vpop.xlane.xlu0 %59
    %v61 = vadd.f32 %v44, %v45
    %62 = vadd.xlane.f32.xlu0 %v61
    %v63 = vpop.xlane.xlu0 %62
    %v64 = vadd.f32 %v46, %v47
    %65 = vadd.xlane.f32.xlu0 %v64
    %v66 = vpop.xlane.xlu0 %65
    %v67 = vadd.f32 %v48, %v49
    %68 = vadd.xlane.f32.xlu0 %v67
    %v69 = vpop.xlane.xlu0 %68
    %v70 = vadd.f32 %v50, %v51
    %71 = vadd.xlane.f32.xlu0 %v70
    %v72 = vpop.xlane.xlu0 %71
    %v73 = vadd.f32 %v52, %v53
    %74 = vadd.xlane.f32.xlu0 %v73
    %v75 = vpop.xlane.xlu0 %74
    %v76 = vadd.f32 %v54, %v55
    %77 = vadd.xlane.f32.xlu0 %v76
    %v78 = vpop.xlane.xlu0 %77
    %v79 = vadd.f32 %v56, %v57
    %80 = vadd.xlane.f32.xlu0 %v79
    %v81 = vpop.xlane.xlu0 %80
    %v82 = vmul.f32 %v60, 0.00390625
    %v83 = vmul.f32 %v63, 0.00390625
    %v84 = vmul.f32 %v66, 0.00390625
    %v85 = vmul.f32 %v69, 0.00390625
    %v86 = vmul.f32 %v72, 0.00390625
    %v87 = vmul.f32 %v75, 0.00390625
    %v88 = vmul.f32 %v78, 0.00390625
    %v89 = vmul.f32 %v81, 0.00390625
    %v90 = vld [vmem:[%s1] sm:$0xff]
    %v91 = vld [vmem:[%s1 + $0x8] sm:$0xff]
    %v92 = vld [vmem:[%s1 + $0x10] sm:$0xff]
    %v93 = vld [vmem:[%s1 + $0x18] sm:$0xff]
    %v94 = vld [vmem:[%s2] sm:$0x1]
    %v96 = vlaneseq
    %v97 = vshrl.u32 %v96, 7
    %v98 = vsub.s32 0, %v97
    %v99 = vrot.slane %v94, %v98
    %v109 = vlaneseq
    %v110 = vand.u32 %v109, 127
    %v111 = vlaneseq
    %v112 = vshrl.u32 %v111, 7
    %v113 = vsub.s32 %v110, %v112
    %v114 = vrot.slane %v82, %v113
    %v115 = vadd.s32 %v110, 4294967288
    %v116 = vlaneseq
    %v117 = vshrl.u32 %v116, 7
    %v118 = vsub.s32 %v115, %v117
    %v119 = vrot.slane %v83, %v118
    %vm120 = vcmask 130112
    %v121 = vsel %vm120, %v119, %v114
    %v122 = vadd.s32 %v110, 4294967280
    %v123 = vlaneseq
    %v124 = vshrl.u32 %v123, 7
    %v125 = vsub.s32 %v122, %v124
    %v126 = vrot.slane %v84, %v125
    %vm127 = vcmask 195712
    %v128 = vsel %vm127, %v126, %v121
    %v129 = vadd.s32 %v110, 4294967272
    %v130 = vlaneseq
    %v131 = vshrl.u32 %v130, 7
    %v132 = vsub.s32 %v129, %v131
    %v133 = vrot.slane %v85, %v132
    %vm134 = vcmask 261312
    %v135 = vsel %vm134, %v133, %v128
    %v136 = vlaneseq
    %v137 = vshrl.u32 %v136, 7
    %v138 = vsub.s32 %v110, %v137
    %v139 = vrot.slane %v86, %v138
    %v140 = vlaneseq
    %v141 = vshrl.u32 %v140, 7
    %v142 = vsub.s32 %v115, %v141
    %v143 = vrot.slane %v87, %v142
    %v144 = vsel %vm120, %v143, %v139
    %v145 = vlaneseq
    %v146 = vshrl.u32 %v145, 7
    %v147 = vsub.s32 %v122, %v146
    %v148 = vrot.slane %v88, %v147
    %v149 = vsel %vm127, %v148, %v144
    %v150 = vlaneseq
    %v151 = vshrl.u32 %v150, 7
    %v152 = vsub.s32 %v129, %v151
    %v153 = vrot.slane %v89, %v152
    %v154 = vsel %vm134, %v153, %v149
    %vm155 = vcmask 1041409
    %v156 = vsel %vm155, %v154, %v135
    %vm157 = vcmask 261120
    %v158 = vsel %vm157, %v156, 0
    %160 = vmatprep.subr.mxu0 0.0
    %161 = vmatpush1.msra.mxu0 %v90
    %162 = vmatprep.subr.mxu0 0.0
    %163 = vmatpush1.msra.mxu0 %v91
    %164 = vmatprep.subr.mxu0 0.0
    %165 = vmatpush1.msra.mxu0 %v92
    %166 = vmatprep.subr.mxu0 0.0
    %167 = vmatpush1.msra.mxu0 %v93
    %168 = vmatprep.subr.mxu0 0.0
    %169 = vmatpush1.msra.mxu0 0.0
    %170 = vmatprep.subr.mxu0 0.0
    %171 = vmatpush1.msra.mxu0 0.0
    %172 = vmatprep.subr.mxu0 0.0
    %173 = vmatpush1.msra.mxu0 0.0
    %174 = vmatprep.subr.mxu0 0.0
    %175 = vmatpush1.msra.mxu0 0.0
    %176 = vmatprep.subr.mxu0 0.0
    %177 = vmatpush1.msra.mxu0 0.0
    %178 = vmatprep.subr.mxu0 0.0
    %179 = vmatpush1.msra.mxu0 0.0
    %180 = vmatprep.subr.mxu0 0.0
    %181 = vmatpush1.msra.mxu0 0.0
    %182 = vmatprep.subr.mxu0 0.0
    %183 = vmatpush1.msra.mxu0 0.0
    %184 = vmatprep.subr.mxu0 0.0
    %185 = vmatpush1.msra.mxu0 0.0
    %186 = vmatprep.subr.mxu0 0.0
    %187 = vmatpush1.msra.mxu0 0.0
    %188 = vmatprep.subr.mxu0 0.0
    %189 = vmatpush1.msra.mxu0 0.0
    %190 = vmatprep.subr.mxu0 0.0
    %191 = vmatpush1.msra.mxu0 0.0
    %192 = vmatprep.subr.mxu0 0.0
    %193 = vmatpush1.msra.mxu0 0.0
    %194 = vmatprep.subr.mxu0 0.0
    %195 = vmatpush1.msra.mxu0 0.0
    %196 = vmatprep.subr.mxu0 0.0
    %197 = vmatpush1.msra.mxu0 0.0
    %198 = vmatprep.subr.mxu0 0.0
    %199 = vmatpush1.msra.mxu0 0.0
    %200 = vmatprep.subr.mxu0 0.0
    %201 = vmatpush1.msra.mxu0 0.0
    %202 = vmatprep.subr.mxu0 0.0
    %203 = vmatpush1.msra.mxu0 0.0
    %204 = vmatprep.subr.mxu0 0.0
    %205 = vmatpush1.msra.mxu0 0.0
    %206 = vmatprep.subr.mxu0 0.0
    %207 = vmatpush1.msra.mxu0 0.0
    %208 = vmatprep.subr.mxu0 0.0
    %209 = vmatpush1.msra.mxu0 0.0
    %210 = vmatprep.subr.mxu0 0.0
    %211 = vmatpush1.msra.mxu0 0.0
    %212 = vmatprep.subr.mxu0 0.0
    %213 = vmatpush1.msra.mxu0 0.0
    %214 = vmatprep.subr.mxu0 0.0
    %215 = vmatpush1.msra.mxu0 0.0
    %216 = vmatprep.subr.mxu0 0.0
    %217 = vmatpush1.msra.mxu0 0.0
    %218 = vmatprep.subr.mxu0 0.0
    %219 = vmatpush1.msra.mxu0 0.0
    %220 = vmatprep.subr.mxu0 0.0
    %221 = vmatpush1.msra.mxu0 0.0
    %222 = vmatprep.subr.mxu0 0.0
    %223 = vmatpush1.msra.mxu0 0.0
    %224 = vmatprep.mubr.f32.mxu0 0.0
    %225 = vmatmul.mubr.f32.gmra.mrb[0].mxu0 %v158
    %v226 = vpop.f32.mrb[0].mxu0
    %v227 = vadd.f32 %v99, %v226
    %v228 = vpop.f32.mrb[0].mxu0
    %229 = vdwg.mxu0
    %v230 = vmax.f32 %v227, 0.0
    %v231 = vld [vmem:[%s3] sm:$0x3]
    %v232 = vld [vmem:[%s4] sm:$0x1]
    %v234 = vlaneseq
    %v235 = vshrl.u32 %v234, 7
    %v236 = vsub.s32 0, %v235
    %v237 = vrot.slane %v232, %v236
    %vm239 = vcmask 15360
    %v241 = vsel %vm239, %v230, 0
    %vm243 = vcmask 1041408
    %v245 = vsel %vm243, %v231, 0
    %247 = vmatprep.subr.mxu0 0.0
    %248 = vmatpush1.msra.mxu0 %v245
    %249 = vmatprep.subr.mxu0 0.0
    %250 = vmatpush1.msra.mxu0 0.0
    %251 = vmatprep.subr.mxu0 0.0
    %252 = vmatpush1.msra.mxu0 0.0
    %253 = vmatprep.subr.mxu0 0.0
    %254 = vmatpush1.msra.mxu0 0.0
    %255 = vmatprep.subr.mxu0 0.0
    %256 = vmatpush1.msra.mxu0 0.0
    %257 = vmatprep.subr.mxu0 0.0
    %258 = vmatpush1.msra.mxu0 0.0
    %259 = vmatprep.subr.mxu0 0.0
    %260 = vmatpush1.msra.mxu0 0.0
    %261 = vmatprep.subr.mxu0 0.0
    %262 = vmatpush1.msra.mxu0 0.0
    %263 = vmatprep.subr.mxu0 0.0
    %264 = vmatpush1.msra.mxu0 0.0
    %265 = vmatprep.subr.mxu0 0.0
    %266 = vmatpush1.msra.mxu0 0.0
    %267 = vmatprep.subr.mxu0 0.0
    %268 = vmatpush1.msra.mxu0 0.0
    %269 = vmatprep.subr.mxu0 0.0
    %270 = vmatpush1.msra.mxu0 0.0
    %271 = vmatprep.subr.mxu0 0.0
    %272 = vmatpush1.msra.mxu0 0.0
    %273 = vmatprep.subr.mxu0 0.0
    %274 = vmatpush1.msra.mxu0 0.0
    %275 = vmatprep.subr.mxu0 0.0
    %276 = vmatpush1.msra.mxu0 0.0
    %277 = vmatprep.subr.mxu0 0.0
    %278 = vmatpush1.msra.mxu0 0.0
    %279 = vmatprep.subr.mxu0 0.0
    %280 = vmatpush1.msra.mxu0 0.0
    %281 = vmatprep.subr.mxu0 0.0
    %282 = vmatpush1.msra.mxu0 0.0
    %283 = vmatprep.subr.mxu0 0.0
    %284 = vmatpush1.msra.mxu0 0.0
    %285 = vmatprep.subr.mxu0 0.0
    %286 = vmatpush1.msra.mxu0 0.0
    %287 = vmatprep.subr.mxu0 0.0
    %288 = vmatpush1.msra.mxu0 0.0
    %289 = vmatprep.subr.mxu0 0.0
    %290 = vmatpush1.msra.mxu0 0.0
    %291 = vmatprep.subr.mxu0 0.0
    %292 = vmatpush1.msra.mxu0 0.0
    %293 = vmatprep.subr.mxu0 0.0
    %294 = vmatpush1.msra.mxu0 0.0
    %295 = vmatprep.subr.mxu0 0.0
    %296 = vmatpush1.msra.mxu0 0.0
    %297 = vmatprep.subr.mxu0 0.0
    %298 = vmatpush1.msra.mxu0 0.0
    %299 = vmatprep.subr.mxu0 0.0
    %300 = vmatpush1.msra.mxu0 0.0
    %301 = vmatprep.subr.mxu0 0.0
    %302 = vmatpush1.msra.mxu0 0.0
    %303 = vmatprep.subr.mxu0 0.0
    %304 = vmatpush1.msra.mxu0 0.0
    %305 = vmatprep.subr.mxu0 0.0
    %306 = vmatpush1.msra.mxu0 0.0
    %307 = vmatprep.subr.mxu0 0.0
    %308 = vmatpush1.msra.mxu0 0.0
    %309 = vmatprep.subr.mxu0 0.0
    %310 = vmatpush1.msra.mxu0 0.0
    %311 = vmatprep.mubr.f32.mxu0 0.0
    %312 = vmatmul.mubr.f32.gmra.mrb[0].mxu0 %v241
    %v313 = vpop.f32.mrb[0].mxu0
    %v314 = vadd.f32 %v237, %v313
    %v315 = vpop.f32.mrb[0].mxu0
    %316 = vdwg.mxu0
    %v317 = vxor.u32 %v314, 2147483648
    %v318 = vmul.f32 %v317, 1.442695
    %v319 = vpow.pop %v318
    %v320 = vadd.f32 %v319, 1.0
    %v321 = vrcp.pop %v320
    %v322 = vmul.f32 1.0, %v321
    %v323 = vld [vmem:[%s5] sm:$0xff]
    %v324 = vld [vmem:[%s5 + $0x8] sm:$0xff]
    %v325 = vld [vmem:[%s5 + $0x10] sm:$0xff]
    %v326 = vld [vmem:[%s5 + $0x18] sm:$0xff]
    %328 = vset.pattern.permute.xlu0 0
    %329 = vperm.xlu0 %328, %v323
    %v330 = vpop.permute.xlu0 %329
    %333 = vset.pattern.permute.xlu0 0
    %334 = vperm.xlu0 %333, %v324
    %v335 = vpop.permute.xlu0 %334
    %338 = vset.pattern.permute.xlu0 0
    %339 = vperm.xlu0 %338, %v325
    %v340 = vpop.permute.xlu0 %339
    %343 = vset.pattern.permute.xlu0 0
    %344 = vperm.xlu0 %343, %v326
    %v345 = vpop.permute.xlu0 %344
    %v347 = vmul.f32 %v42, %v330
    %v348 = vmul.f32 %v43, %v330
    %v349 = vmul.f32 %v44, %v335
    %v350 = vmul.f32 %v45, %v335
    %v351 = vmul.f32 %v46, %v340
    %v352 = vmul.f32 %v47, %v340
    %v353 = vmul.f32 %v48, %v345
    %v354 = vmul.f32 %v49, %v345
    %v355 = vmul.f32 %v50, %v330
    %v356 = vmul.f32 %v51, %v330
    %v357 = vmul.f32 %v52, %v335
    %v358 = vmul.f32 %v53, %v335
    %v359 = vmul.f32 %v54, %v340
    %v360 = vmul.f32 %v55, %v340
    %v361 = vmul.f32 %v56, %v345
    %v362 = vmul.f32 %v57, %v345
    %v363 = vadd.f32 %v347, %v349
    %v364 = vadd.f32 %v363, %v351
    %v365 = vadd.f32 %v364, %v353
    %v366 = vrot.slane %v365, 4
    %v367 = vadd.f32 %v365, %v366
    %v368 = vrot.slane %v367, 2
    %v369 = vadd.f32 %v367, %v368
    %v370 = vrot.slane %v369, 1
    %v371 = vadd.f32 %v369, %v370
    %v372 = vadd.f32 %v348, %v350
    %v373 = vadd.f32 %v372, %v352
    %v374 = vadd.f32 %v373, %v354
    %v375 = vrot.slane %v374, 4
    %v376 = vadd.f32 %v374, %v375
    %v377 = vrot.slane %v376, 2
    %v378 = vadd.f32 %v376, %v377
    %v379 = vrot.slane %v378, 1
    %v380 = vadd.f32 %v378, %v379
    %v381 = vadd.f32 %v355, %v357
    %v382 = vadd.f32 %v381, %v359
    %v383 = vadd.f32 %v382, %v361
    %v384 = vrot.slane %v383, 4
    %v385 = vadd.f32 %v383, %v384
    %v386 = vrot.slane %v385, 2
    %v387 = vadd.f32 %v385, %v386
    %v388 = vrot.slane %v387, 1
    %v389 = vadd.f32 %v387, %v388
    %v390 = vadd.f32 %v356, %v358
    %v391 = vadd.f32 %v390, %v360
    %v392 = vadd.f32 %v391, %v362
    %v393 = vrot.slane %v392, 4
    %v394 = vadd.f32 %v392, %v393
    %v395 = vrot.slane %v394, 2
    %v396 = vadd.f32 %v394, %v395
    %v397 = vrot.slane %v396, 1
    %v398 = vadd.f32 %v396, %v397
    %s399 = sld [smem:[#allocation2]]
    %v400 = vstv %s399
    %v401 = vadd.f32 %v371, %v400
    %v402 = vadd.f32 %v380, %v400
    %v403 = vadd.f32 %v389, %v400
    %v404 = vadd.f32 %v398, %v400
    %v405 = vxor.u32 %v401, 2147483648
    %v406 = vxor.u32 %v402, 2147483648
    %v407 = vxor.u32 %v403, 2147483648
    %v408 = vxor.u32 %v404, 2147483648
    %v409 = vmul.f32 %v405, 1.442695
    %v410 = vpow.pop %v409
    %v411 = vmul.f32 %v406, 1.442695
    %v412 = vpow.pop %v411
    %v413 = vmul.f32 %v407, 1.442695
    %v414 = vpow.pop %v413
    %v415 = vmul.f32 %v408, 1.442695
    %v416 = vpow.pop %v415
    %v417 = vadd.f32 %v410, 1.0
    %v418 = vadd.f32 %v412, 1.0
    %v419 = vadd.f32 %v414, 1.0
    %v420 = vadd.f32 %v416, 1.0
    %v421 = vrcp.pop %v417
    %v422 = vmul.f32 1.0, %v421
    %v423 = vrcp.pop %v418
    %v424 = vmul.f32 1.0, %v423
    %v425 = vrcp.pop %v419
    %v426 = vmul.f32 1.0, %v425
    %v427 = vrcp.pop %v420
    %v428 = vmul.f32 1.0, %v427
    %v429 = vlaneseq
    %v430 = vshrl.u32 %v429, 7
    %v431 = vsub.s32 0, %v430
    %v432 = vrot.slane %v322, %v431
    %434 = vbcast.lane.b32.xlu0 %v432, 256
    %v435 = vpop.permute.xlu0 %434
    %s437 = sor.u32 256, 8
    %438 = vbcast.lane.b32.xlu0 %v432, %s437
    %v439 = vpop.permute.xlu0 %438
    %s441 = sor.u32 256, 16
    %442 = vbcast.lane.b32.xlu0 %v432, %s441
    %v443 = vpop.permute.xlu0 %442
    %s445 = sor.u32 256, 24
    %446 = vbcast.lane.b32.xlu0 %v432, %s445
    %v447 = vpop.permute.xlu0 %446
    %v448 = vlaneseq
    %v449 = vshrl.u32 %v448, 7
    %v450 = vsub.s32 1, %v449
    %v451 = vrot.slane %v322, %v450
    %453 = vbcast.lane.b32.xlu0 %v451, 256
    %v454 = vpop.permute.xlu0 %453
    %s456 = sor.u32 256, 8
    %457 = vbcast.lane.b32.xlu0 %v451, %s456
    %v458 = vpop.permute.xlu0 %457
    %s460 = sor.u32 256, 16
    %461 = vbcast.lane.b32.xlu0 %v451, %s460
    %v462 = vpop.permute.xlu0 %461
    %s464 = sor.u32 256, 24
    %465 = vbcast.lane.b32.xlu0 %v451, %s464
    %v466 = vpop.permute.xlu0 %465
    %v467 = vadd.f32 %v435, %v422
    %v468 = vadd.f32 %v435, %v424
    %v469 = vadd.f32 %v439, %v422
    %v470 = vadd.f32 %v439, %v424
    %v471 = vadd.f32 %v443, %v422
    %v472 = vadd.f32 %v443, %v424
    %v473 = vadd.f32 %v447, %v422
    %v474 = vadd.f32 %v447, %v424
    %v475 = vadd.f32 %v454, %v426
    %v476 = vadd.f32 %v454, %v428
    %v477 = vadd.f32 %v458, %v426
    %v478 = vadd.f32 %v458, %v428
    %v479 = vadd.f32 %v462, %v426
    %v480 = vadd.f32 %v462, %v428
    %v481 = vadd.f32 %v466, %v426
    %v482 = vadd.f32 %v466, %v428
    %v483 = vmul.f32 %v42, %v467
    %v484 = vmul.f32 %v43, %v468
    %v485 = vmul.f32 %v44, %v469
    %v486 = vmul.f32 %v45, %v470
    %v487 = vmul.f32 %v46, %v471
    %v488 = vmul.f32 %v47, %v472
    %v489 = vmul.f32 %v48, %v473
    %v490 = vmul.f32 %v49, %v474
    %v491 = vmul.f32 %v50, %v475
    %v492 = vmul.f32 %v51, %v476
    %v493 = vmul.f32 %v52, %v477
    %v494 = vmul.f32 %v53, %v478
    %v495 = vmul.f32 %v54, %v479
    %v496 = vmul.f32 %v55, %v480
    %v497 = vmul.f32 %v56, %v481
    %v498 = vmul.f32 %v57, %v482
    %499 = vst [vmem:[#allocation6] sm:$0xff] %v483
    %500 = vst [vmem:[#allocation6 + $0x8] sm:$0xff] %v484
    %501 = vst [vmem:[#allocation6 + $0x10] sm:$0xff] %v485
    %502 = vst [vmem:[#allocation6 + $0x18] sm:$0xff] %v486
    %503 = vst [vmem:[#allocation6 + $0x20] sm:$0xff] %v487
    %504 = vst [vmem:[#allocation6 + $0x28] sm:$0xff] %v488
    %505 = vst [vmem:[#allocation6 + $0x30] sm:$0xff] %v489
    %506 = vst [vmem:[#allocation6 + $0x38] sm:$0xff] %v490
    %507 = vst [vmem:[#allocation6 + $0x40] sm:$0xff] %v491
    %508 = vst [vmem:[#allocation6 + $0x48] sm:$0xff] %v492
    %509 = vst [vmem:[#allocation6 + $0x50] sm:$0xff] %v493
    %510 = vst [vmem:[#allocation6 + $0x58] sm:$0xff] %v494
    %511 = vst [vmem:[#allocation6 + $0x60] sm:$0xff] %v495
    %512 = vst [vmem:[#allocation6 + $0x68] sm:$0xff] %v496
    %513 = vst [vmem:[#allocation6 + $0x70] sm:$0xff] %v497
    %514 = vst [vmem:[#allocation6 + $0x78] sm:$0xff] %v498
    // Predicated region
    $region34: #{tpu_custom_call.1} parent=1 // pred_check
      _
    $region35: #{tpu_custom_call.1} parent=1 // pred_check_branch
      %516 = sbr.rel (0) target = $region37
    $region36: #{tpu_custom_call.1} parent=1 // pred_region
      %s518 = ssub.s32 2048, 2048
      %519 = vsyncadd [#allocation5], %s518
      %s520 = sshll.u32 [#allocation6], 4
      %s521 = int_to_ptr.vmem [resolvable:$true] %s520
      %526 = dma.vmem_to_hbm [thread:$0]  %s521, 2048, %s7, [#allocation5], 256, 256, 16
    $region37: #{tpu_custom_call.1} parent=1 // pred_fallthru
      _
    // Predicated region
    $region38: #{tpu_custom_call.1} parent=1 // pred_check
      _
    $region39: #{tpu_custom_call.1} parent=1 // pred_check_branch
      %528 = sbr.rel (0) target = $region41
    $region40: #{tpu_custom_call.1} parent=1 // pred_region
      %529 = dma.done [#allocation5], 2048
    $region41: #{tpu_custom_call.1} parent=1 // pred_fallthru
      _
    %530 = vsyncpa [#allocation4], 1
    %531 = vsyncpa [#allocation5], 1

</llo_original>
